<compile_context>
chip_gen: v7x
topology: tpu7x:2x2x1
jax: 0.10.0
libtpu: 0.0.40
codegen_flags: <defaults>
</compile_context>

<pallas_src>
import functools

import jax
import jax.numpy as jnp
from jax.experimental import pallas as pl
from jax.experimental.pallas import tpu as pltpu


def _round_up(x, m):
    return ((x + m - 1) // m) * m


def _policy_kernel(x_ref, w1t_ref, w2t_ref, w3t_ref, b1_ref, b2_ref, b3_ref,
                   out_ref, *, approx_sigmoid):
    """Feature-major MLP tile: every intermediate is (features, TM) so the batch
    rides the 128-lane axis (lane-dense VPU/EUP work and lane-dense output store)."""
    cdt = w1t_ref.dtype                                  # MXU operand dtype (bf16/f32)

    # (TM, S) -> (S, TM): one small XLU transpose of the narrow input.
    # Cast first so the transpose moves half the bytes when bf16.
    xt = jnp.transpose(x_ref[...].astype(cdt))

    # Layer 1: (H, S) @ (S, TM) -> (H, TM); f32 accumulate, f32 bias/ReLU (v5e-safe).
    h = jnp.dot(w1t_ref[...], xt, preferred_element_type=jnp.float32)
    h = jnp.maximum(h + b1_ref[...], 0.0)

    # Layer 2: (H, H) @ (H, TM) -> (H, TM).
    h = jnp.dot(w2t_ref[...], h.astype(cdt), preferred_element_type=jnp.float32)
    h = jnp.maximum(h + b2_ref[...], 0.0)

    # Output layer: (P, H) @ (H, TM) -> (P, TM), sigmoid in f32 on the EUP.
    logits = jnp.dot(w3t_ref[...], h.astype(cdt), preferred_element_type=jnp.float32)
    logits = logits + b3_ref[...]
    denom = 1.0 + jnp.exp(-logits)
    if approx_sigmoid:
        out_ref[...] = pl.reciprocal(denom, approx=True)
    else:
        out_ref[...] = 1.0 / denom


def low_level_policy_forward(states, params, *, tile_m_max=2048, use_bf16=True,
                             approx_sigmoid=True, batch_major_output=True):
    """states: (B, state_dim); params: dict w1/b1/w2/b2/w3/b3 with w_i (din, dout).
    Returns (B, para_dim) f32 (or (para_dim, B) if batch_major_output=False)."""
    B, S = states.shape
    H = params["w1"].shape[1]
    P = params["w3"].shape[1]
    assert params["w1"].shape == (S, H)
    assert params["w2"].shape == (H, H)
    assert params["w3"].shape == (H, P)
    assert tile_m_max % 128 == 0, "batch tiles must be lane-dense (multiple of 128)"

    w_dtype = jnp.bfloat16 if use_bf16 else jnp.float32

    # Pre-transposed (feature-major) weights; biases as (features, 1) column vectors.
    # Separate arrays (no packed slab) -> no sublane-offset alignment concerns for
    # arbitrary state_dim; constant index_maps keep them VMEM-resident regardless.
    w1t = jnp.asarray(params["w1"], jnp.float32).T.astype(w_dtype)      # (H, S)
    w2t = jnp.asarray(params["w2"], jnp.float32).T.astype(w_dtype)      # (H, H)
    w3t = jnp.asarray(params["w3"], jnp.float32).T.astype(w_dtype)      # (P, H)
    b1 = jnp.asarray(params["b1"], jnp.float32).reshape(H, 1)
    b2 = jnp.asarray(params["b2"], jnp.float32).reshape(H, 1)
    b3 = jnp.asarray(params["b3"], jnp.float32).reshape(P, 1)

    # Batch tile: as large as possible (per-step pipeline overhead dominates for this
    # tiny MLP), but capped so the grid has >= 2 steps for larger B (v7x has 2 TCs and
    # "parallel" only shards grid steps). No input padding: ragged last block is fine
    # because rows are independent (OOB reads only feed OOB, discarded, output columns).
    tm_target = min(tile_m_max, _round_up(pl.cdiv(B, 2), 128))
    if B <= tm_target and B % 8 == 0:
        tm = B                # exact single block, zero over-read
    else:
        tm = tm_target        # multiple of 128; ragged block(s) handled by Pallas
    grid = (pl.cdiv(B, tm),)

    out_pm = pl.pallas_call(
        functools.partial(_policy_kernel, approx_sigmoid=approx_sigmoid),
        out_shape=jax.ShapeDtypeStruct((P, B), jnp.float32),
        grid=grid,
        in_specs=[
            pl.BlockSpec((tm, S), lambda i: (i, 0)),     # batch tile (pipelined)
            pl.BlockSpec((H, S), lambda i: (0, 0)),      # weights / biases: constant
            pl.BlockSpec((H, H), lambda i: (0, 0)),      #   index_map -> fetched once,
            pl.BlockSpec((P, H), lambda i: (0, 0)),      #   stay VMEM-resident
            pl.BlockSpec((H, 1), lambda i: (0, 0)),
            pl.BlockSpec((H, 1), lambda i: (0, 0)),
            pl.BlockSpec((P, 1), lambda i: (0, 0)),
        ],
        out_specs=pl.BlockSpec((P, tm), lambda i: (0, i)),   # lane-dense (P, TM) store
        compiler_params=pltpu.CompilerParams(
            dimension_semantics=("parallel",),   # shard batch tiles across v7x's 2 TCs
        ),
    )(states, w1t, w2t, w3t, b1, b2, b3)

    # Module semantics: (B, P). Consumers that can take (P, B) directly should pass
    # batch_major_output=False and skip this small XLA transpose.
    return out_pm.T if batch_major_output else out_pm


def init_params(key, state_dim, para_dim, hidden=(64, 64)):
    """Deterministic synthetic parameters (not a checkpoint load)."""
    dims = (state_dim,) + tuple(hidden) + (para_dim,)
    params = {}
    keys = jax.random.split(key, 2 * (len(dims) - 1))
    for i, (din, dout) in enumerate(zip(dims[:-1], dims[1:]), start=1):
        scale = 1.0 / jnp.sqrt(jnp.float32(din))
        params[f"w{i}"] = (
            jax.random.uniform(keys[2 * i - 2], (din, dout), jnp.float32, -1.0, 1.0) * scale)
        params[f"b{i}"] = (
            jax.random.uniform(keys[2 * i - 1], (1, dout), jnp.float32, -1.0, 1.0) * scale)
    return params


def reference_forward(states, params, use_bf16=True):
    """Pure-JAX reference mirroring the kernel math (bf16 operands, f32 accumulation)."""
    cdt = jnp.bfloat16 if use_bf16 else jnp.float32
    w1, w2, w3 = (params[k].astype(cdt) for k in ("w1", "w2", "w3"))
    x = states.astype(jnp.float32)
    h = jnp.dot(x.astype(cdt), w1, preferred_element_type=jnp.float32) + params["b1"]
    h = jnp.maximum(h, 0.0)
    h = jnp.dot(h.astype(cdt), w2, preferred_element_type=jnp.float32) + params["b2"]
    h = jnp.maximum(h, 0.0)
    logits = jnp.dot(h.astype(cdt), w3, preferred_element_type=jnp.float32) + params["b3"]
    return jax.nn.sigmoid(logits)


if __name__ == "__main__":
    key = jax.random.PRNGKey(0)
    k_x, k_p, k_x2 = jax.random.split(key, 3)

    B, state_dim, para_dim = 8, 16, 8  # state_shape=(16,), para_shape=(8,)
    states = jax.random.normal(k_x, (B, state_dim), jnp.float32)
    params = init_params(k_p, state_dim, para_dim, hidden=(64, 64))

    out = jax.block_until_ready(low_level_policy_forward(states, params))
    ref = reference_forward(states, params)
    assert out.shape == (B, para_dim)
    assert jnp.allclose(out, ref, atol=2e-3), float(jnp.max(jnp.abs(out - ref)))

    # Exercise the multi-block path: B=300 -> tm=256, grid=2 (second v7x TC busy),
    # ragged last block handled by Pallas with no wrapper-side padding copy.
    B2 = 300
    states2 = jax.random.normal(k_x2, (B2, state_dim), jnp.float32)
    out2 = jax.block_until_ready(low_level_policy_forward(states2, params))
    ref2 = reference_forward(states2, params)
    assert out2.shape == (B2, para_dim)
    assert jnp.allclose(out2, ref2, atol=2e-3), float(jnp.max(jnp.abs(out2 - ref2)))

    print("KERNEL_OK")
</pallas_src>

<mosaic_0001>
module attributes {stable_mosaic.version = 11 : i64} {
  func.func @_policy_kernel(%arg0: i32, %arg1: memref<8x16xf32, #tpu.memory_space<vmem>>, %arg2: memref<64x16xbf16, #tpu.memory_space<vmem>>, %arg3: memref<64x64xbf16, #tpu.memory_space<vmem>>, %arg4: memref<8x64xbf16, #tpu.memory_space<vmem>>, %arg5: memref<64x1xf32, #tpu.memory_space<vmem>>, %arg6: memref<64x1xf32, #tpu.memory_space<vmem>>, %arg7: memref<8x1xf32, #tpu.memory_space<vmem>>, %arg8: memref<8x8xf32, #tpu.memory_space<vmem>>) attributes {dimension_semantics = [#tpu.dimension_semantics<parallel>], iteration_bounds = array<i64: 1>, scalar_prefetch = 0 : i64, scratch_operands = 0 : i64, tpu.core_type = #tpu.core_type<tc>, window_params = [{transform_indices = @transform_0, window_bounds = array<i64: 8, 16>}, {pipeline_mode = #tpu.pipeline_mode<synchronous>, transform_indices = @transform_1, window_bounds = array<i64: 64, 16>}, {pipeline_mode = #tpu.pipeline_mode<synchronous>, transform_indices = @transform_2, window_bounds = array<i64: 64, 64>}, {pipeline_mode = #tpu.pipeline_mode<synchronous>, transform_indices = @transform_3, window_bounds = array<i64: 8, 64>}, {pipeline_mode = #tpu.pipeline_mode<synchronous>, transform_indices = @transform_4, window_bounds = array<i64: 64, 1>}, {pipeline_mode = #tpu.pipeline_mode<synchronous>, transform_indices = @transform_5, window_bounds = array<i64: 64, 1>}, {pipeline_mode = #tpu.pipeline_mode<synchronous>, transform_indices = @transform_6, window_bounds = array<i64: 8, 1>}, {transform_indices = @transform_7, window_bounds = array<i64: 8, 8>}]} {
    %c0 = arith.constant 0 : index
    %c0_0 = arith.constant 0 : index
    %0 = vector.load %arg1[%c0, %c0_0] : memref<8x16xf32, #tpu.memory_space<vmem>>, vector<8x16xf32>
    %1 = arith.truncf %0 : vector<8x16xf32> to vector<8x16xbf16>
    %2 = tpu.transpose %1, [1, 0] : vector<8x16xbf16> -> vector<16x8xbf16>
    %c0_1 = arith.constant 0 : index
    %c0_2 = arith.constant 0 : index
    %3 = vector.load %arg2[%c0_1, %c0_2] : memref<64x16xbf16, #tpu.memory_space<vmem>>, vector<64x16xbf16>
    %cst = arith.constant dense<0.000000e+00> : vector<64x8xf32>
    %4 = tpu.matmul %3, %2, %cst {dimension_numbers = #tpu.dot_dimension_numbers<[1], [0], [0], [1], [0, 0, 1, 1], [], []>} : vector<64x16xbf16>, vector<16x8xbf16>, vector<64x8xf32> -> vector<64x8xf32>
    %c0_3 = arith.constant 0 : index
    %c0_4 = arith.constant 0 : index
    %5 = vector.load %arg5[%c0_3, %c0_4] : memref<64x1xf32, #tpu.memory_space<vmem>>, vector<64x1xf32>
    %6 = vector.broadcast %5 : vector<64x1xf32> to vector<64x8xf32>
    %7 = arith.addf %4, %6 : vector<64x8xf32>
    %cst_5 = arith.constant 0.000000e+00 : f32
    %8 = vector.broadcast %cst_5 : f32 to vector<64x8xf32>
    %9 = arith.maximumf %7, %8 : vector<64x8xf32>
    %c0_6 = arith.constant 0 : index
    %c0_7 = arith.constant 0 : index
    %10 = vector.load %arg3[%c0_6, %c0_7] : memref<64x64xbf16, #tpu.memory_space<vmem>>, vector<64x64xbf16>
    %11 = arith.truncf %9 : vector<64x8xf32> to vector<64x8xbf16>
    %cst_8 = arith.constant dense<0.000000e+00> : vector<64x8xf32>
    %12 = tpu.matmul %10, %11, %cst_8 {dimension_numbers = #tpu.dot_dimension_numbers<[1], [0], [0], [1], [0, 0, 1, 1], [], []>} : vector<64x64xbf16>, vector<64x8xbf16>, vector<64x8xf32> -> vector<64x8xf32>
    %c0_9 = arith.constant 0 : index
    %c0_10 = arith.constant 0 : index
    %13 = vector.load %arg6[%c0_9, %c0_10] : memref<64x1xf32, #tpu.memory_space<vmem>>, vector<64x1xf32>
    %14 = vector.broadcast %13 : vector<64x1xf32> to vector<64x8xf32>
    %15 = arith.addf %12, %14 : vector<64x8xf32>
    %cst_11 = arith.constant 0.000000e+00 : f32
    %16 = vector.broadcast %cst_11 : f32 to vector<64x8xf32>
    %17 = arith.maximumf %15, %16 : vector<64x8xf32>
    %c0_12 = arith.constant 0 : index
    %c0_13 = arith.constant 0 : index
    %18 = vector.load %arg4[%c0_12, %c0_13] : memref<8x64xbf16, #tpu.memory_space<vmem>>, vector<8x64xbf16>
    %19 = arith.truncf %17 : vector<64x8xf32> to vector<64x8xbf16>
    %cst_14 = arith.constant dense<0.000000e+00> : vector<8x8xf32>
    %20 = tpu.matmul %18, %19, %cst_14 {dimension_numbers = #tpu.dot_dimension_numbers<[1], [0], [0], [1], [0, 0, 1, 1], [], []>} : vector<8x64xbf16>, vector<64x8xbf16>, vector<8x8xf32> -> vector<8x8xf32>
    %c0_15 = arith.constant 0 : index
    %c0_16 = arith.constant 0 : index
    %21 = vector.load %arg7[%c0_15, %c0_16] : memref<8x1xf32, #tpu.memory_space<vmem>>, vector<8x1xf32>
    %22 = vector.broadcast %21 : vector<8x1xf32> to vector<8x8xf32>
    %23 = arith.addf %20, %22 : vector<8x8xf32>
    %cst_17 = arith.constant 0.000000e+00 : f32
    %24 = vector.broadcast %cst_17 : f32 to vector<8x8xf32>
    %25 = arith.subf %24, %23 : vector<8x8xf32>
    %26 = math.exp %25 : vector<8x8xf32>
    %cst_18 = arith.constant 1.000000e+00 : f32
    %27 = vector.broadcast %cst_18 : f32 to vector<8x8xf32>
    %28 = arith.addf %27, %26 : vector<8x8xf32>
    %29 = tpu.reciprocal %28 {approx = true} : vector<8x8xf32> -> vector<8x8xf32>
    %c0_19 = arith.constant 0 : index
    %c0_20 = arith.constant 0 : index
    %30 = vector.load %arg8[%c0_19, %c0_20] : memref<8x8xf32, #tpu.memory_space<vmem>>, vector<8x8xf32>
    tpu.vector_store %arg8[%c0_19, %c0_20], %29 {strides = array<i32>} : memref<8x8xf32, #tpu.memory_space<vmem>>, vector<8x8xf32>,
    return
  }
  func.func @transform_0(%arg0: i32) -> (i32, i32) {
    %c0_i32 = arith.constant 0 : i32
    %c0_i32_0 = arith.constant 0 : i32
    return %arg0, %c0_i32 : i32, i32
  }
  func.func @transform_1(%arg0: i32) -> (i32, i32) {
    %c0_i32 = arith.constant 0 : i32
    %c0_i32_0 = arith.constant 0 : i32
    %c0_i32_1 = arith.constant 0 : i32
    return %c0_i32, %c0_i32_0 : i32, i32
  }
  func.func @transform_2(%arg0: i32) -> (i32, i32) {
    %c0_i32 = arith.constant 0 : i32
    %c0_i32_0 = arith.constant 0 : i32
    %c0_i32_1 = arith.constant 0 : i32
    return %c0_i32, %c0_i32_0 : i32, i32
  }
  func.func @transform_3(%arg0: i32) -> (i32, i32) {
    %c0_i32 = arith.constant 0 : i32
    %c0_i32_0 = arith.constant 0 : i32
    %c0_i32_1 = arith.constant 0 : i32
    return %c0_i32, %c0_i32_0 : i32, i32
  }
  func.func @transform_4(%arg0: i32) -> (i32, i32) {
    %c0_i32 = arith.constant 0 : i32
    %c0_i32_0 = arith.constant 0 : i32
    %c0_i32_1 = arith.constant 0 : i32
    return %c0_i32, %c0_i32_0 : i32, i32
  }
  func.func @transform_5(%arg0: i32) -> (i32, i32) {
    %c0_i32 = arith.constant 0 : i32
    %c0_i32_0 = arith.constant 0 : i32
    %c0_i32_1 = arith.constant 0 : i32
    return %c0_i32, %c0_i32_0 : i32, i32
  }
  func.func @transform_6(%arg0: i32) -> (i32, i32) {
    %c0_i32 = arith.constant 0 : i32
    %c0_i32_0 = arith.constant 0 : i32
    %c0_i32_1 = arith.constant 0 : i32
    return %c0_i32, %c0_i32_0 : i32, i32
  }
  func.func @transform_7(%arg0: i32) -> (i32, i32) {
    %c0_i32 = arith.constant 0 : i32
    %c0_i32_0 = arith.constant 0 : i32
    return %c0_i32, %arg0 : i32, i32
  }
}

</mosaic_0001>

<llo_original>
// kernel: tpu_custom_call.1
$region0: #{tpu_custom_call.1}
  #allocation0 [shape = 'u32[]', space=smem, size = 0x4, offset = 0x4, fixed_abs, tag = 'smem constant byte address 0x4 - core index']
  #allocation1 [shape = 'u32[144,128]{1,0:T(1,128)}', space=vmem, size = 0x12000, scoped, tag = 'internal scratch']
  %s0 = inlined_call_operand.vmem [shape: f32[8,16], index: 0, kind: input, shape index: {}]
  %s1 = inlined_call_operand.vmem [shape: bf16[64,16], index: 1, kind: input, shape index: {}]
  %s2 = inlined_call_operand.vmem [shape: bf16[64,64], index: 2, kind: input, shape index: {}]
  %s3 = inlined_call_operand.vmem [shape: bf16[8,64], index: 3, kind: input, shape index: {}]
  %s4 = inlined_call_operand.vmem [shape: f32[64,1], index: 4, kind: input, shape index: {}]
  %s5 = inlined_call_operand.vmem [shape: f32[64,1], index: 5, kind: input, shape index: {}]
  %s6 = inlined_call_operand.vmem [shape: f32[8,1], index: 6, kind: input, shape index: {}]
  %s7 = inlined_call_operand.hbm [shape: f32[8,8], index: 7, kind: output, shape index: {}]
  %s8 = sld [smem:[#allocation0]]
  $region38: #{tpu_custom_call.1} parent=0
    _
  %s10 = ssub.s32 1, %s8
  %s11 = scalar_select 0, %s10, %s8
  $region1: #{tpu_custom_call.1} parent=0
    #allocation2 [shape = 'u8[4096]{0}', space=vmem, size = 0x1000, scoped, tag = 'output window, operand 0, single buffered']
    #allocation3 [shape = 's32[1]{0}', space=sflag, size = 0x4, scoped, tag = 'scoped memory for tpu_custom_call.1']
    %12 = vsyncpa [#allocation3], 0
    // Predicated region
    $region2: #{tpu_custom_call.1} parent=1 // pred_check
      _
    $region3: #{tpu_custom_call.1} parent=1 // pred_check_branch
      %14 = sbr.rel (0) target = $region5
    $region4: #{tpu_custom_call.1} parent=1 // pred_region
      _
    $region5: #{tpu_custom_call.1} parent=1 // pred_fallthru
      _
    // Predicated region
    $region6: #{tpu_custom_call.1} parent=1 // pred_check
      _
    $region7: #{tpu_custom_call.1} parent=1 // pred_check_branch
      %16 = sbr.rel (0) target = $region9
    $region8: #{tpu_custom_call.1} parent=1 // pred_region
      _
    $region9: #{tpu_custom_call.1} parent=1 // pred_fallthru
      _
    // Predicated region
    $region10: #{tpu_custom_call.1} parent=1 // pred_check
      _
    $region11: #{tpu_custom_call.1} parent=1 // pred_check_branch
      %18 = sbr.rel (0) target = $region13
    $region12: #{tpu_custom_call.1} parent=1 // pred_region
      _
    $region13: #{tpu_custom_call.1} parent=1 // pred_fallthru
      _
    // Predicated region
    $region14: #{tpu_custom_call.1} parent=1 // pred_check
      _
    $region15: #{tpu_custom_call.1} parent=1 // pred_check_branch
      %20 = sbr.rel (0) target = $region17
    $region16: #{tpu_custom_call.1} parent=1 // pred_region
      _
    $region17: #{tpu_custom_call.1} parent=1 // pred_fallthru
      _
    // Predicated region
    $region18: #{tpu_custom_call.1} parent=1 // pred_check
      _
    $region19: #{tpu_custom_call.1} parent=1 // pred_check_branch
      %22 = sbr.rel (0) target = $region21
    $region20: #{tpu_custom_call.1} parent=1 // pred_region
      _
    $region21: #{tpu_custom_call.1} parent=1 // pred_fallthru
      _
    // Predicated region
    $region22: #{tpu_custom_call.1} parent=1 // pred_check
      _
    $region23: #{tpu_custom_call.1} parent=1 // pred_check_branch
      %24 = sbr.rel (0) target = $region25
    $region24: #{tpu_custom_call.1} parent=1 // pred_region
      _
    $region25: #{tpu_custom_call.1} parent=1 // pred_fallthru
      _
    // Predicated region
    $region26: #{tpu_custom_call.1} parent=1 // pred_check
      _
    $region27: #{tpu_custom_call.1} parent=1 // pred_check_branch
      %26 = sbr.rel (0) target = $region29
    $region28: #{tpu_custom_call.1} parent=1 // pred_region
      _
    $region29: #{tpu_custom_call.1} parent=1 // pred_fallthru
      _
    %v28 = vld [vmem:[%s0] sm:$0xff]
    %v29 = vpack.c.bf16 %v28, %v28
    %v30 = vld [vmem:[%s1] sm:$0xf]
    %v31 = vld [vmem:[%s1 + $0x4] sm:$0xf]
    %v32 = vld [vmem:[%s1 + $0x8] sm:$0xf]
    %v33 = vld [vmem:[%s1 + $0xc] sm:$0xf]
    %v34 = vld [vmem:[%s1 + $0x10] sm:$0xf]
    %v35 = vld [vmem:[%s1 + $0x14] sm:$0xf]
    %v36 = vld [vmem:[%s1 + $0x18] sm:$0xf]
    %v37 = vld [vmem:[%s1 + $0x1c] sm:$0xf]
    %v38 = vld [vmem:[%s4] sm:$0xff]
    %v39 = vld [vmem:[%s4 + $0x8] sm:$0xff]
    %v40 = vld [vmem:[%s4 + $0x10] sm:$0xff]
    %v41 = vld [vmem:[%s4 + $0x18] sm:$0xff]
    %v42 = vld [vmem:[%s4 + $0x20] sm:$0xff]
    %v43 = vld [vmem:[%s4 + $0x28] sm:$0xff]
    %v44 = vld [vmem:[%s4 + $0x30] sm:$0xff]
    %v45 = vld [vmem:[%s4 + $0x38] sm:$0xff]
    %47 = vset.pattern.permute.xlu0 0
    %48 = vperm.xlu0 %47, %v38
    %v49 = vpop.permute.xlu0 %48
    %52 = vset.pattern.permute.xlu0 0
    %53 = vperm.xlu0 %52, %v39
    %v54 = vpop.permute.xlu0 %53
    %57 = vset.pattern.permute.xlu0 0
    %58 = vperm.xlu0 %57, %v40
    %v59 = vpop.permute.xlu0 %58
    %62 = vset.pattern.permute.xlu0 0
    %63 = vperm.xlu0 %62, %v41
    %v64 = vpop.permute.xlu0 %63
    %67 = vset.pattern.permute.xlu0 0
    %68 = vperm.xlu0 %67, %v42
    %v69 = vpop.permute.xlu0 %68
    %72 = vset.pattern.permute.xlu0 0
    %73 = vperm.xlu0 %72, %v43
    %v74 = vpop.permute.xlu0 %73
    %77 = vset.pattern.permute.xlu0 0
    %78 = vperm.xlu0 %77, %v44
    %v79 = vpop.permute.xlu0 %78
    %82 = vset.pattern.permute.xlu0 0
    %83 = vperm.xlu0 %82, %v45
    %v84 = vpop.permute.xlu0 %83
    %v94 = vunpack.c.l.b16 %v30
    %v95 = vunpack.c.l.b16 %v31
    %v96 = vunpack.c.l.b16 %v32
    %v97 = vunpack.c.l.b16 %v33
    %v98 = vunpack.c.l.b16 %v34
    %v99 = vunpack.c.l.b16 %v35
    %v100 = vunpack.c.l.b16 %v36
    %v101 = vunpack.c.l.b16 %v37
    %v102 = vpack.c.b16 %v95, %v94
    %v103 = vpack.c.b16 %v97, %v96
    %v104 = vpack.c.b16 %v99, %v98
    %v105 = vpack.c.b16 %v101, %v100
    %vm106 = vcmask 130048
    %v108 = vsel %vm106, %v102, 0
    %v111 = vsel %vm106, %v103, 0
    %v114 = vsel %vm106, %v104, 0
    %v117 = vsel %vm106, %v105, 0
    %v120 = vsel %vm106, %v29, 0
    %122 = vmatprep.subr.bf16.mxu0 0
    %123 = vmatpush1.bf16.xpose.msra.mxu0 %v120
    %124 = vmatprep.subr.bf16.mxu0 0
    %125 = vmatpush1.bf16.xpose.msra.mxu0 0
    %126 = vmatprep.subr.bf16.mxu0 0
    %127 = vmatpush1.bf16.xpose.msra.mxu0 0
    %128 = vmatprep.subr.bf16.mxu0 0
    %129 = vmatpush1.bf16.xpose.msra.mxu0 0
    %130 = vmatprep.subr.bf16.mxu0 0
    %131 = vmatpush1.bf16.xpose.msra.mxu0 0
    %132 = vmatprep.subr.bf16.mxu0 0
    %133 = vmatpush1.bf16.xpose.msra.mxu0 0
    %134 = vmatprep.subr.bf16.mxu0 0
    %135 = vmatpush1.bf16.xpose.msra.mxu0 0
    %136 = vmatprep.subr.bf16.mxu0 0
    %137 = vmatpush1.bf16.xpose.msra.mxu0 0
    %138 = vmatprep.subr.bf16.mxu0 0
    %139 = vmatpush1.bf16.xpose.msra.mxu0 0
    %140 = vmatprep.subr.bf16.mxu0 0
    %141 = vmatpush1.bf16.xpose.msra.mxu0 0
    %142 = vmatprep.subr.bf16.mxu0 0
    %143 = vmatpush1.bf16.xpose.msra.mxu0 0
    %144 = vmatprep.subr.bf16.mxu0 0
    %145 = vmatpush1.bf16.xpose.msra.mxu0 0
    %146 = vmatprep.subr.bf16.mxu0 0
    %147 = vmatpush1.bf16.xpose.msra.mxu0 0
    %148 = vmatprep.subr.bf16.mxu0 0
    %149 = vmatpush1.bf16.xpose.msra.mxu0 0
    %150 = vmatprep.subr.bf16.mxu0 0
    %151 = vmatpush1.bf16.xpose.msra.mxu0 0
    %152 = vmatprep.subr.bf16.mxu0 0
    %153 = vmatpush1.bf16.xpose.msra.mxu0 0
    %154 = vmatprep.mubr.bf16.mxu0 0
    %155 = vmatmul.mubr.bf16.gmra.mrb[0].mxu0 %v108
    %v156 = vpop.f32.mrb[0].mxu0
    %v157 = vadd.f32 %v49, %v156
    %v158 = vpop.f32.mrb[0].mxu0
    %v159 = vpop.f32.mrb[0].mxu0
    %v160 = vadd.f32 %v54, %v159
    %v161 = vpop.f32.mrb[0].mxu0
    %162 = vmatprep.mubr.bf16.mxu0 0
    %163 = vmatmul.mubr.bf16.gmra.mrb[0].mxu0 %v111
    %v164 = vpop.f32.mrb[0].mxu0
    %v165 = vadd.f32 %v59, %v164
    %v166 = vpop.f32.mrb[0].mxu0
    %v167 = vpop.f32.mrb[0].mxu0
    %v168 = vadd.f32 %v64, %v167
    %v169 = vpop.f32.mrb[0].mxu0
    %170 = vmatprep.mubr.bf16.mxu0 0
    %171 = vmatmul.mubr.bf16.gmra.mrb[0].mxu0 %v114
    %v172 = vpop.f32.mrb[0].mxu0
    %v173 = vadd.f32 %v69, %v172
    %v174 = vpop.f32.mrb[0].mxu0
    %v175 = vpop.f32.mrb[0].mxu0
    %v176 = vadd.f32 %v74, %v175
    %v177 = vpop.f32.mrb[0].mxu0
    %178 = vmatprep.mubr.bf16.mxu0 0
    %179 = vmatmul.mubr.bf16.gmra.mrb[0].mxu0 %v117
    %v180 = vpop.f32.mrb[0].mxu0
    %v181 = vadd.f32 %v79, %v180
    %v182 = vpop.f32.mrb[0].mxu0
    %v183 = vpop.f32.mrb[0].mxu0
    %v184 = vadd.f32 %v84, %v183
    %v185 = vpop.f32.mrb[0].mxu0
    %186 = vdwg.mxu0
    %v187 = vmax.f32 %v157, 0.0
    %v188 = vmax.f32 %v160, 0.0
    %v189 = vmax.f32 %v165, 0.0
    %v190 = vmax.f32 %v168, 0.0
    %v191 = vmax.f32 %v173, 0.0
    %v192 = vmax.f32 %v176, 0.0
    %v193 = vmax.f32 %v181, 0.0
    %v194 = vmax.f32 %v184, 0.0
    %v195 = vld [vmem:[%s2] sm:$0xf]
    %v196 = vld [vmem:[%s2 + $0x4] sm:$0xf]
    %v197 = vld [vmem:[%s2 + $0x8] sm:$0xf]
    %v198 = vld [vmem:[%s2 + $0xc] sm:$0xf]
    %v199 = vld [vmem:[%s2 + $0x10] sm:$0xf]
    %v200 = vld [vmem:[%s2 + $0x14] sm:$0xf]
    %v201 = vld [vmem:[%s2 + $0x18] sm:$0xf]
    %v202 = vld [vmem:[%s2 + $0x1c] sm:$0xf]
    %v203 = vpack.c.bf16 %v188, %v187
    %v204 = vpack.c.bf16 %v190, %v189
    %v205 = vpack.c.bf16 %v192, %v191
    %v206 = vpack.c.bf16 %v194, %v193
    %v207 = vld [vmem:[%s5] sm:$0xff]
    %v208 = vld [vmem:[%s5 + $0x8] sm:$0xff]
    %v209 = vld [vmem:[%s5 + $0x10] sm:$0xff]
    %v210 = vld [vmem:[%s5 + $0x18] sm:$0xff]
    %v211 = vld [vmem:[%s5 + $0x20] sm:$0xff]
    %v212 = vld [vmem:[%s5 + $0x28] sm:$0xff]
    %v213 = vld [vmem:[%s5 + $0x30] sm:$0xff]
    %v214 = vld [vmem:[%s5 + $0x38] sm:$0xff]
    %216 = vset.pattern.permute.xlu0 0
    %217 = vperm.xlu0 %216, %v207
    %v218 = vpop.permute.xlu0 %217
    %221 = vset.pattern.permute.xlu0 0
    %222 = vperm.xlu0 %221, %v208
    %v223 = vpop.permute.xlu0 %222
    %226 = vset.pattern.permute.xlu0 0
    %227 = vperm.xlu0 %226, %v209
    %v228 = vpop.permute.xlu0 %227
    %231 = vset.pattern.permute.xlu0 0
    %232 = vperm.xlu0 %231, %v210
    %v233 = vpop.permute.xlu0 %232
    %236 = vset.pattern.permute.xlu0 0
    %237 = vperm.xlu0 %236, %v211
    %v238 = vpop.permute.xlu0 %237
    %241 = vset.pattern.permute.xlu0 0
    %242 = vperm.xlu0 %241, %v212
    %v243 = vpop.permute.xlu0 %242
    %246 = vset.pattern.permute.xlu0 0
    %247 = vperm.xlu0 %246, %v213
    %v248 = vpop.permute.xlu0 %247
    %251 = vset.pattern.permute.xlu0 0
    %252 = vperm.xlu0 %251, %v214
    %v253 = vpop.permute.xlu0 %252
    %v263 = vunpack.c.l.b16 %v195
    %v264 = vunpack.c.l.b16 %v196
    %v265 = vunpack.c.l.b16 %v197
    %v266 = vunpack.c.l.b16 %v198
    %v267 = vunpack.c.l.b16 %v199
    %v268 = vunpack.c.l.b16 %v200
    %v269 = vunpack.c.l.b16 %v201
    %v270 = vunpack.c.l.b16 %v202
    %v271 = vpack.c.b16 %v264, %v263
    %v272 = vpack.c.b16 %v266, %v265
    %v273 = vpack.c.b16 %v268, %v267
    %v274 = vpack.c.b16 %v270, %v269
    %vm275 = vcmask 523264
    %v277 = vsel %vm275, %v271, 0
    %v280 = vsel %vm275, %v272, 0
    %v283 = vsel %vm275, %v273, 0
    %v286 = vsel %vm275, %v274, 0
    %288 = vmatprep.subr.bf16.mxu0 0
    %289 = vmatpush1.bf16.msra.mxu0 %v203
    %290 = vmatprep.subr.bf16.mxu0 0
    %291 = vmatpush1.bf16.msra.mxu0 %v204
    %292 = vmatprep.subr.bf16.mxu0 0
    %293 = vmatpush1.bf16.msra.mxu0 %v205
    %294 = vmatprep.subr.bf16.mxu0 0
    %295 = vmatpush1.bf16.msra.mxu0 %v206
    %296 = vmatprep.subr.bf16.mxu0 0
    %297 = vmatpush1.bf16.msra.mxu0 0
    %298 = vmatprep.subr.bf16.mxu0 0
    %299 = vmatpush1.bf16.msra.mxu0 0
    %300 = vmatprep.subr.bf16.mxu0 0
    %301 = vmatpush1.bf16.msra.mxu0 0
    %302 = vmatprep.subr.bf16.mxu0 0
    %303 = vmatpush1.bf16.msra.mxu0 0
    %304 = vmatprep.subr.bf16.mxu0 0
    %305 = vmatpush1.bf16.msra.mxu0 0
    %306 = vmatprep.subr.bf16.mxu0 0
    %307 = vmatpush1.bf16.msra.mxu0 0
    %308 = vmatprep.subr.bf16.mxu0 0
    %309 = vmatpush1.bf16.msra.mxu0 0
    %310 = vmatprep.subr.bf16.mxu0 0
    %311 = vmatpush1.bf16.msra.mxu0 0
    %312 = vmatprep.subr.bf16.mxu0 0
    %313 = vmatpush1.bf16.msra.mxu0 0
    %314 = vmatprep.subr.bf16.mxu0 0
    %315 = vmatpush1.bf16.msra.mxu0 0
    %316 = vmatprep.subr.bf16.mxu0 0
    %317 = vmatpush1.bf16.msra.mxu0 0
    %318 = vmatprep.subr.bf16.mxu0 0
    %319 = vmatpush1.bf16.msra.mxu0 0
    %320 = vmatprep.mubr.bf16.mxu0 0
    %321 = vmatmul.mubr.bf16.gmra.mrb[0].mxu0 %v277
    %v322 = vpop.f32.mrb[0].mxu0
    %v323 = vadd.f32 %v218, %v322
    %v324 = vpop.f32.mrb[0].mxu0
    %v325 = vpop.f32.mrb[0].mxu0
    %v326 = vadd.f32 %v223, %v325
    %v327 = vpop.f32.mrb[0].mxu0
    %328 = vmatprep.mubr.bf16.mxu0 0
    %329 = vmatmul.mubr.bf16.gmra.mrb[0].mxu0 %v280
    %v330 = vpop.f32.mrb[0].mxu0
    %v331 = vadd.f32 %v228, %v330
    %v332 = vpop.f32.mrb[0].mxu0
    %v333 = vpop.f32.mrb[0].mxu0
    %v334 = vadd.f32 %v233, %v333
    %v335 = vpop.f32.mrb[0].mxu0
    %336 = vmatprep.mubr.bf16.mxu0 0
    %337 = vmatmul.mubr.bf16.gmra.mrb[0].mxu0 %v283
    %v338 = vpop.f32.mrb[0].mxu0
    %v339 = vadd.f32 %v238, %v338
    %v340 = vpop.f32.mrb[0].mxu0
    %v341 = vpop.f32.mrb[0].mxu0
    %v342 = vadd.f32 %v243, %v341
    %v343 = vpop.f32.mrb[0].mxu0
    %344 = vmatprep.mubr.bf16.mxu0 0
    %345 = vmatmul.mubr.bf16.gmra.mrb[0].mxu0 %v286
    %v346 = vpop.f32.mrb[0].mxu0
    %v347 = vadd.f32 %v248, %v346
    %v348 = vpop.f32.mrb[0].mxu0
    %v349 = vpop.f32.mrb[0].mxu0
    %v350 = vadd.f32 %v253, %v349
    %v351 = vpop.f32.mrb[0].mxu0
    %352 = vdwg.mxu0
    %v353 = vmax.f32 %v323, 0.0
    %v354 = vmax.f32 %v326, 0.0
    %v355 = vmax.f32 %v331, 0.0
    %v356 = vmax.f32 %v334, 0.0
    %v357 = vmax.f32 %v339, 0.0
    %v358 = vmax.f32 %v342, 0.0
    %v359 = vmax.f32 %v347, 0.0
    %v360 = vmax.f32 %v350, 0.0
    %v361 = vld [vmem:[%s3] sm:$0xf]
    %v362 = vpack.c.bf16 %v354, %v353
    %v363 = vpack.c.bf16 %v356, %v355
    %v364 = vpack.c.bf16 %v358, %v357
    %v365 = vpack.c.bf16 %v360, %v359
    %v366 = vld [vmem:[%s6] sm:$0xff]
    %368 = vset.pattern.permute.xlu0 0
    %369 = vperm.xlu0 %368, %v366
    %v370 = vpop.permute.xlu0 %369
    %v373 = vsel %vm275, %v361, 0
    %375 = vmatprep.subr.bf16.mxu0 0
    %376 = vmatpush1.bf16.msra.mxu0 %v362
    %377 = vmatprep.subr.bf16.mxu0 0
    %378 = vmatpush1.bf16.msra.mxu0 %v363
    %379 = vmatprep.subr.bf16.mxu0 0
    %380 = vmatpush1.bf16.msra.mxu0 %v364
    %381 = vmatprep.subr.bf16.mxu0 0
    %382 = vmatpush1.bf16.msra.mxu0 %v365
    %383 = vmatprep.subr.bf16.mxu0 0
    %384 = vmatpush1.bf16.msra.mxu0 0
    %385 = vmatprep.subr.bf16.mxu0 0
    %386 = vmatpush1.bf16.msra.mxu0 0
    %387 = vmatprep.subr.bf16.mxu0 0
    %388 = vmatpush1.bf16.msra.mxu0 0
    %389 = vmatprep.subr.bf16.mxu0 0
    %390 = vmatpush1.bf16.msra.mxu0 0
    %391 = vmatprep.subr.bf16.mxu0 0
    %392 = vmatpush1.bf16.msra.mxu0 0
    %393 = vmatprep.subr.bf16.mxu0 0
    %394 = vmatpush1.bf16.msra.mxu0 0
    %395 = vmatprep.subr.bf16.mxu0 0
    %396 = vmatpush1.bf16.msra.mxu0 0
    %397 = vmatprep.subr.bf16.mxu0 0
    %398 = vmatpush1.bf16.msra.mxu0 0
    %399 = vmatprep.subr.bf16.mxu0 0
    %400 = vmatpush1.bf16.msra.mxu0 0
    %401 = vmatprep.subr.bf16.mxu0 0
    %402 = vmatpush1.bf16.msra.mxu0 0
    %403 = vmatprep.subr.bf16.mxu0 0
    %404 = vmatpush1.bf16.msra.mxu0 0
    %405 = vmatprep.subr.bf16.mxu0 0
    %406 = vmatpush1.bf16.msra.mxu0 0
    %407 = vmatprep.mubr.bf16.mxu0 0
    %408 = vmatmul.mubr.bf16.gmra.mrb[0].mxu0 %v373
    %v409 = vpop.f32.mrb[0].mxu0
    %v410 = vadd.f32 %v370, %v409
    %v411 = vpop.f32.mrb[0].mxu0
    %v412 = vpop.f32.mrb[0].mxu0
    %v413 = vpop.f32.mrb[0].mxu0
    %414 = vdwg.mxu0
    %v415 = vsub.f32 0.0, %v410
    %v416 = vmul.f32 %v415, 1.442695
    %v417 = vpow.pop %v416
    %v418 = vadd.f32 %v417, 1.0
    %v419 = vrcp.pop %v418
    %vm420 = vcmask 64512
    %421 = vst.msk [vmem:[#allocation2] sm:$0xff] %vm420, %v419
    // Predicated region
    $region30: #{tpu_custom_call.1} parent=1 // pred_check
      _
    $region31: #{tpu_custom_call.1} parent=1 // pred_check_branch
      %423 = sbr.rel (0) target = $region33
    $region32: #{tpu_custom_call.1} parent=1 // pred_region
      %s425 = ssub.s32 128, 128
      %426 = vsyncadd [#allocation3], %s425
      %s428 = sshll.u32 [#allocation2], 4
      %s429 = int_to_ptr.vmem [resolvable:$true] %s428
      %431 = dma.vmem_to_hbm [thread:$0]  %s429, 128, %s7, [#allocation3]
    $region33: #{tpu_custom_call.1} parent=1 // pred_fallthru
      _
    // Predicated region
    $region34: #{tpu_custom_call.1} parent=1 // pred_check
      _
    $region35: #{tpu_custom_call.1} parent=1 // pred_check_branch
      %433 = sbr.rel (0) target = $region37
    $region36: #{tpu_custom_call.1} parent=1 // pred_region
      %434 = dma.done [#allocation3], 128
    $region37: #{tpu_custom_call.1} parent=1 // pred_fallthru
      _
    %435 = vsyncpa [#allocation3], 1

</llo_original>
